<compile_context>
chip_gen: v7x
topology: tpu7x:2x2x1
jax: 0.10.0
libtpu: 0.0.40
codegen_flags: <defaults>
</compile_context>

<pallas_src>
import functools

import jax
import jax.numpy as jnp
from jax.experimental import pallas as pl
from jax.experimental.pallas import tpu as pltpu


def _nll_smooth_kernel(x_ref, t_ref, out_ref, *, confidence, smoothing,
                       n_rows, n_classes, block_rows, tiles_per_core,
                       need_mask):
    i = pl.program_id(1)

    @pl.when(i == 0)
    def _init():
        out_ref[...] = jnp.zeros_like(out_ref)

    x = x_ref[...].astype(jnp.float32)          # (block_rows, C)
    t = t_ref[...].astype(jnp.float32)          # (block_rows, C)

    # Row-wise shifted softmax pieces; logprobs itself is never materialized:
    #   loss_row = -sum((shifted - lse) * w, -1)
    #            = lse * sum_w - sum(shifted * w, -1)
    # with w = confidence*t + smoothing/C and sum_w = confidence*sum(t) + smoothing.
    m = jnp.max(x, axis=-1, keepdims=True)
    shifted = x - m
    lse = jnp.log(jnp.sum(jnp.exp(shifted), axis=-1, keepdims=True))

    w = confidence * t + (smoothing / n_classes)
    sum_w = confidence * jnp.sum(t, axis=-1, keepdims=True) + smoothing
    loss = lse * sum_w - jnp.sum(shifted * w, axis=-1, keepdims=True)   # (br, 1)
    # TODO(synk): if a bundle dump shows VALU binding (bf16 inputs on v7x), split
    # further into sum(shifted*t) / sum(shifted) and fold confidence/smoothing in
    # as per-row scalars (trades 1 VALU op/elem for 1 extra XLU reduce per row).

    if need_mask:
        # Rows past the true batch (ragged last tile / surplus clamped tiles)
        # must contribute exactly zero.  Keep the mask on the FINAL per-row loss
        # so Inf/NaN produced by padded garbage rows is discarded by the select,
        # and keep tile_g UNCLAMPED so surplus tiles mask everything out.
        tile_g = pl.program_id(0) * tiles_per_core + i
        ragged = (tile_g + 1) * block_rows > n_rows

        @pl.when(ragged)
        def _masked():
            rows = tile_g * block_rows + jax.lax.broadcasted_iota(
                jnp.int32, loss.shape, 0)
            out_ref[...] += jnp.sum(jnp.where(rows < n_rows, loss, 0.0))

        @pl.when(jnp.logical_not(ragged))
        def _full():
            out_ref[...] += jnp.sum(loss)
    else:
        out_ref[...] += jnp.sum(loss)


def _tpu_info():
    try:
        return pltpu.get_tpu_info()
    except Exception:
        return None


def _vmem_capacity_bytes():
    info = _tpu_info()
    if info is not None:
        try:
            v = int(getattr(info, "vmem_capacity_bytes"))
            if v > 0:
                return v
        except Exception:
            pass
    return 64 << 20          # conservative default (v7x-sized VMEM)


def _detect_num_tensorcores():
    """Return 2 only when the runtime clearly reports 2 TensorCores; else 1."""
    info = _tpu_info()
    if info is not None:
        for name in ("num_cores", "num_tensorcores", "tensorcores_per_chip",
                     "tensorcore_count"):
            try:
                v = int(getattr(info, name))
            except Exception:
                continue
            if v == 2:
                return 2
    return 1


def _round_down(v, m):
    return max(m, (v // m) * m)


def _pick_block_rows(n, c, x_dtype, t_dtype, vmem_limit_bytes, *, max_rows=8192):
    """Largest row tile whose VMEM footprint fits under the scoped limit.

    Charges the 2x double-buffered (x, target) input tiles plus ~4 f32 full-tile
    temporaries (x_f32, t_f32, exp(shifted), w) so large tiles cannot collide
    with v7x's 64 MiB physical VMEM while still streaming MiB-scale steps.
    """
    xb = jnp.dtype(x_dtype).itemsize
    tb = jnp.dtype(t_dtype).itemsize
    per_row = 2 * c * (xb + tb) + 4 * c * 4
    budget = int(vmem_limit_bytes * 0.9) - (64 << 10)
    cap = max(8, budget // per_row)
    cap = min(cap, max_rows)
    if cap >= n:
        return n                       # one full-batch tile (full-dim block)
    if cap >= 32:
        return _round_down(cap, 32)    # multiple of 32 covers f32/bf16/int8 packing
    return _round_down(cap, 8)         # pathologically wide C


def nll_multilabel_smooth(x, target, *, smoothing=0.1, block_rows=None,
                          num_cores=None, vmem_limit_bytes=None):
    """Pallas implementation of NLLMultiLabelSmooth.forward (training mode).

    x / target may be bf16 (or int8 0/1 targets); all math runs in f32 in-kernel,
    so stream the narrowest dtype available — the kernel is HBM-bandwidth bound.
    """
    assert x.shape == target.shape and x.ndim == 2
    n, c = x.shape
    confidence = 1.0 - smoothing

    if vmem_limit_bytes is None:
        # ~3/4 of physical VMEM: 96 MiB on 128-MiB parts (v5e/v6e), 48 MiB on v7x.
        vmem_limit_bytes = max(32 << 20, (_vmem_capacity_bytes() * 3) // 4)
    if block_rows is None:
        block_rows = _pick_block_rows(n, c, x.dtype, target.dtype, vmem_limit_bytes)

    total_tiles = -(-n // block_rows)
    if num_cores is None:
        num_cores = _detect_num_tensorcores()
    num_cores = max(1, min(int(num_cores), total_tiles))   # never more cores than work
    tiles_per_core = -(-total_tiles // num_cores)
    last_tile = total_tiles - 1

    # Padding rows exist either because the last tile is ragged or because the
    # (num_cores, tiles_per_core) grid has surplus steps that re-read (clamped)
    # the last tile; both cases are zeroed by the in-kernel row mask.
    need_clamp = num_cores * tiles_per_core != total_tiles
    need_mask = need_clamp or (total_tiles * block_rows != n)

    if need_clamp:
        def in_map(core, i):
            # Never DMA out of bounds; surplus tiles are masked to zero in-kernel.
            return (jnp.minimum(core * tiles_per_core + i, last_tile), 0)
    else:
        def in_map(core, i):
            return (core * tiles_per_core + i, 0)

    kernel = functools.partial(
        _nll_smooth_kernel,
        confidence=confidence,
        smoothing=smoothing,
        n_rows=n,
        n_classes=c,
        block_rows=block_rows,
        tiles_per_core=tiles_per_core,
        need_mask=need_mask,
    )

    # CORE_PARALLEL only when there is genuinely more than one core's worth of
    # work (v7x); on single-TC chips the leading axis is 1-wide and arbitrary.
    core_sem = (getattr(pltpu, "CORE_PARALLEL", pltpu.PARALLEL)
                if num_cores > 1 else pltpu.ARBITRARY)

    out = pl.pallas_call(
        kernel,
        out_shape=jax.ShapeDtypeStruct((num_cores * 8, 128), jnp.float32),
        grid_spec=pltpu.PrefetchScalarGridSpec(
            num_scalar_prefetch=0,
            grid=(num_cores, tiles_per_core),
            in_specs=[
                pl.BlockSpec((block_rows, c), in_map),
                pl.BlockSpec((block_rows, c), in_map),
            ],
            out_specs=pl.BlockSpec((8, 128), lambda core, i: (core, 0)),
        ),
        compiler_params=pltpu.CompilerParams(
            dimension_semantics=(core_sem, pltpu.ARBITRARY),
            vmem_limit_bytes=int(vmem_limit_bytes),
        ),
    )(x, target)

    partials = out[0::8, 0]                   # one partial sum per core block
    return jnp.sum(partials) / jnp.float32(n)


def _reference(x, target, smoothing=0.1):
    x = x.astype(jnp.float32)
    target = target.astype(jnp.float32)
    logprobs = jax.nn.log_softmax(x, axis=-1)
    nll_loss = jnp.sum(-logprobs * target, axis=-1)
    smooth_loss = -jnp.mean(logprobs, axis=-1)
    loss = (1.0 - smoothing) * nll_loss + smoothing * smooth_loss
    return jnp.mean(loss)


if __name__ == "__main__":
    key = jax.random.PRNGKey(0)
    k1, k2, k3, k4, k5, k6 = jax.random.split(key, 6)

    # Test 1: small multi-label problem, auto tile (single full-batch tile, no mask).
    N, C = 16, 128
    x = jax.random.normal(k1, (N, C), dtype=jnp.float32)
    target = (jax.random.uniform(k2, (N, C)) < 0.05).astype(jnp.float32)
    out = jax.block_until_ready(nll_multilabel_smooth(x, target, smoothing=0.1))
    ref = _reference(x, target, smoothing=0.1)
    assert jnp.allclose(out, ref, rtol=1e-5, atol=1e-4), (out, ref)

    # Test 2: ragged batch + forced small tile -> multi-tile accumulation into the
    # resident output block, pl.when-guarded row mask on the ragged last tile.
    N2, C2 = 20, 256
    x2 = jax.random.normal(k3, (N2, C2), dtype=jnp.float32)
    target2 = (jax.random.uniform(k4, (N2, C2)) < 0.05).astype(jnp.float32)
    out2 = jax.block_until_ready(
        nll_multilabel_smooth(x2, target2, smoothing=0.1, block_rows=8))
    ref2 = _reference(x2, target2, smoothing=0.1)
    assert jnp.allclose(out2, ref2, rtol=1e-5, atol=1e-4), (out2, ref2)

    # Test 3: narrow streaming dtypes (bf16 logits, bf16 0/1 targets); the f32
    # upcast happens in-kernel, so the reference on the same inputs must match.
    N3, C3 = 24, 128
    x3 = jax.random.normal(k5, (N3, C3), dtype=jnp.bfloat16)
    target3 = (jax.random.uniform(k6, (N3, C3)) < 0.05).astype(jnp.bfloat16)
    out3 = jax.block_until_ready(nll_multilabel_smooth(x3, target3, smoothing=0.1))
    ref3 = _reference(x3, target3, smoothing=0.1)
    assert jnp.allclose(out3, ref3, rtol=1e-4, atol=1e-3), (out3, ref3)

    print("KERNEL_OK")
</pallas_src>

<mosaic_0001>
module attributes {stable_mosaic.version = 11 : i64} {
  func.func @_nll_smooth_kernel(%arg0: i32, %arg1: i32, %arg2: memref<16x128xf32, #tpu.memory_space<vmem>>, %arg3: memref<16x128xf32, #tpu.memory_space<vmem>>, %arg4: memref<8x128xf32, #tpu.memory_space<vmem>>) attributes {dimension_semantics = [#tpu.dimension_semantics<arbitrary>, #tpu.dimension_semantics<arbitrary>], iteration_bounds = array<i64: 1, 1>, scalar_prefetch = 0 : i64, scratch_operands = 0 : i64, tpu.core_type = #tpu.core_type<tc>, window_params = [{transform_indices = @transform_0, window_bounds = array<i64: 16, 128>}, {transform_indices = @transform_1, window_bounds = array<i64: 16, 128>}, {transform_indices = @transform_2, window_bounds = array<i64: 8, 128>}]} {
    %c0_i32 = arith.constant 0 : i32
    %0 = arith.cmpi eq, %arg1, %c0_i32 : i32
    %1 = arith.extui %0 : i1 to i32
    %c0_i32_0 = arith.constant 0 : i32
    %2 = arith.cmpi ne, %1, %c0_i32_0 : i32
    scf.if %2 {
      %cst_16 = arith.constant 0.000000e+00 : f32
      %36 = vector.broadcast %cst_16 : f32 to vector<8x128xf32>
      %c0_17 = arith.constant 0 : index
      %c0_18 = arith.constant 0 : index
      %37 = vector.load %arg4[%c0_17, %c0_18] : memref<8x128xf32, #tpu.memory_space<vmem>>, vector<8x128xf32>
      tpu.vector_store %arg4[%c0_17, %c0_18], %36 {strides = array<i32>} : memref<8x128xf32, #tpu.memory_space<vmem>>, vector<8x128xf32>,
    } else {
    }
    %c0 = arith.constant 0 : index
    %c0_1 = arith.constant 0 : index
    %3 = vector.load %arg2[%c0, %c0_1] : memref<16x128xf32, #tpu.memory_space<vmem>>, vector<16x128xf32>
    %c0_2 = arith.constant 0 : index
    %c0_3 = arith.constant 0 : index
    %4 = vector.load %arg3[%c0_2, %c0_3] : memref<16x128xf32, #tpu.memory_space<vmem>>, vector<16x128xf32>
    %cst = arith.constant dense<0xFF800000> : vector<16xf32>
    %5 = vector.multi_reduction <maximumf>, %3, %cst [1] : vector<16x128xf32> to vector<16xf32>
    %6 = vector.shape_cast %5 : vector<16xf32> to vector<16x1xf32>
    %7 = vector.broadcast %6 : vector<16x1xf32> to vector<16x128xf32>
    %8 = arith.subf %3, %7 : vector<16x128xf32>
    %9 = math.exp %8 : vector<16x128xf32>
    %cst_4 = arith.constant dense<0.000000e+00> : vector<16xf32>
    %10 = vector.multi_reduction <add>, %9, %cst_4 [1] : vector<16x128xf32> to vector<16xf32>
    %11 = vector.shape_cast %10 : vector<16xf32> to vector<16x1xf32>
    %12 = math.log %11 : vector<16x1xf32>
    %cst_5 = arith.constant 0.899999976 : f32
    %13 = vector.broadcast %cst_5 : f32 to vector<16x128xf32>
    %14 = arith.mulf %13, %4 : vector<16x128xf32>
    %cst_6 = arith.constant 7.812500e-04 : f32
    %15 = vector.broadcast %cst_6 : f32 to vector<16x128xf32>
    %16 = arith.addf %14, %15 : vector<16x128xf32>
    %cst_7 = arith.constant dense<0.000000e+00> : vector<16xf32>
    %17 = vector.multi_reduction <add>, %4, %cst_7 [1] : vector<16x128xf32> to vector<16xf32>
    %18 = vector.shape_cast %17 : vector<16xf32> to vector<16x1xf32>
    %cst_8 = arith.constant 0.899999976 : f32
    %19 = vector.broadcast %cst_8 : f32 to vector<16x1xf32>
    %20 = arith.mulf %19, %18 : vector<16x1xf32>
    %cst_9 = arith.constant 1.000000e-01 : f32
    %21 = vector.broadcast %cst_9 : f32 to vector<16x1xf32>
    %22 = arith.addf %20, %21 : vector<16x1xf32>
    %23 = arith.mulf %12, %22 : vector<16x1xf32>
    %24 = arith.mulf %8, %16 : vector<16x128xf32>
    %cst_10 = arith.constant dense<0.000000e+00> : vector<16xf32>
    %25 = vector.multi_reduction <add>, %24, %cst_10 [1] : vector<16x128xf32> to vector<16xf32>
    %26 = vector.shape_cast %25 : vector<16xf32> to vector<16x1xf32>
    %27 = arith.subf %23, %26 : vector<16x1xf32>
    %c0_11 = arith.constant 0 : index
    %c0_12 = arith.constant 0 : index
    %28 = vector.load %arg4[%c0_11, %c0_12] : memref<8x128xf32, #tpu.memory_space<vmem>>, vector<8x128xf32>
    %29 = vector.shape_cast %27 : vector<16x1xf32> to vector<1x16x1xf32>
    %cst_13 = arith.constant dense<0.000000e+00> : vector<1xf32>
    %30 = vector.multi_reduction <add>, %29, %cst_13 [1, 2] : vector<1x16x1xf32> to vector<1xf32>
    %31 = vector.shape_cast %30 : vector<1xf32> to vector<1x1x1xf32>
    %32 = vector.extract %31[0, 0, 0] : f32 from vector<1x1x1xf32>
    %33 = vector.broadcast %32 : f32 to vector<8x128xf32>
    %34 = arith.addf %28, %33 : vector<8x128xf32>
    %c0_14 = arith.constant 0 : index
    %c0_15 = arith.constant 0 : index
    %35 = vector.load %arg4[%c0_14, %c0_15] : memref<8x128xf32, #tpu.memory_space<vmem>>, vector<8x128xf32>
    tpu.vector_store %arg4[%c0_14, %c0_15], %34 {strides = array<i32>} : memref<8x128xf32, #tpu.memory_space<vmem>>, vector<8x128xf32>,
    return
  }
  func.func @transform_0(%arg0: i32, %arg1: i32) -> (i32, i32) {
    %c1_i32 = arith.constant 1 : i32
    %0 = arith.muli %arg0, %c1_i32 : i32
    %1 = arith.addi %0, %arg1 : i32
    %c0_i32 = arith.constant 0 : i32
    %c0_i32_0 = arith.constant 0 : i32
    return %1, %c0_i32 : i32, i32
  }
  func.func @transform_1(%arg0: i32, %arg1: i32) -> (i32, i32) {
    %c1_i32 = arith.constant 1 : i32
    %0 = arith.muli %arg0, %c1_i32 : i32
    %1 = arith.addi %0, %arg1 : i32
    %c0_i32 = arith.constant 0 : i32
    %c0_i32_0 = arith.constant 0 : i32
    return %1, %c0_i32 : i32, i32
  }
  func.func @transform_2(%arg0: i32, %arg1: i32) -> (i32, i32) {
    %c0_i32 = arith.constant 0 : i32
    %c0_i32_0 = arith.constant 0 : i32
    return %arg0, %c0_i32 : i32, i32
  }
}

</mosaic_0001>

<llo_original>
// kernel: tpu_custom_call.1
$region0: #{tpu_custom_call.1}
  #allocation0 [shape = 'u32[]', space=smem, size = 0x4, offset = 0x4, fixed_abs, tag = 'smem constant byte address 0x4 - core index']
  #allocation1 [shape = 'u32[144,128]{1,0:T(1,128)}', space=vmem, size = 0x12000, scoped, tag = 'internal scratch']
  %s0 = inlined_call_operand.hbm [shape: f32[16,128], index: 0, kind: input, shape index: {}]
  %s1 = inlined_call_operand.hbm [shape: f32[16,128], index: 1, kind: input, shape index: {}]
  %s2 = inlined_call_operand.hbm [shape: f32[8,128], index: 2, kind: output, shape index: {}]
  %s3 = sld [smem:[#allocation0]]
  $region30: #{tpu_custom_call.1} parent=0
    _
  %s5 = ssub.s32 1, %s3
  %s6 = scalar_select 0, %s5, %s3
  $region1: #{tpu_custom_call.1} parent=0
    #allocation2 [shape = 'u8[8192]{0}', space=vmem, size = 0x2000, scoped, tag = 'input window, operand 0, single buffered']
    #allocation3 [shape = 's32[1]{0}', space=sflag, size = 0x4, scoped, tag = 'scoped memory for tpu_custom_call.1']
    #allocation4 [shape = 's32[1]{0}', space=sflag, size = 0x4, scoped, tag = 'scoped memory for tpu_custom_call.1']
    #allocation5 [shape = 'u8[8192]{0}', space=vmem, size = 0x2000, scoped, tag = 'input window, operand 1, single buffered']
    #allocation6 [shape = 's32[1]{0}', space=sflag, size = 0x4, scoped, tag = 'scoped memory for tpu_custom_call.1']
    #allocation7 [shape = 'u8[4096]{0}', space=vmem, size = 0x1000, scoped, tag = 'output window, operand 0, single buffered']
    %7 = vsyncpa [#allocation3], 0
    %8 = vsyncpa [#allocation6], 0
    %9 = vsyncpa [#allocation4], 0
    // Predicated region
    $region2: #{tpu_custom_call.1} parent=1 // pred_check
      _
    $region3: #{tpu_custom_call.1} parent=1 // pred_check_branch
      %11 = sbr.rel (0) target = $region5
    $region4: #{tpu_custom_call.1} parent=1 // pred_region
      %s12 = sadd.s32 0, 0
      %s13 = smul.u32 2, %s12
      %s15 = ssub.s32 256, 256
      %16 = vsyncadd [#allocation3], %s15
      %s17 = smul.addr %s13, 128
      %s18 = scalar_lea.hbm %s0, %s17
      %s19 = sshll.u32 [#allocation2], 4
      %s20 = int_to_ptr.vmem [resolvable:$true] %s19
      %25 = dma.hbm_to_vmem [thread:$0]  %s18, 256, %s20, [#allocation3], 128, 128, 8
    $region5: #{tpu_custom_call.1} parent=1 // pred_fallthru
      _
    // Predicated region
    $region6: #{tpu_custom_call.1} parent=1 // pred_check
      _
    $region7: #{tpu_custom_call.1} parent=1 // pred_check_branch
      %27 = sbr.rel (0) target = $region9
    $region8: #{tpu_custom_call.1} parent=1 // pred_region
      %s28 = sadd.s32 0, 0
      %s29 = smul.u32 2, %s28
      %s31 = ssub.s32 256, 256
      %32 = vsyncadd [#allocation6], %s31
      %s33 = smul.addr %s29, 128
      %s34 = scalar_lea.hbm %s1, %s33
      %s35 = sshll.u32 [#allocation5], 4
      %s36 = int_to_ptr.vmem [resolvable:$true] %s35
      %41 = dma.hbm_to_vmem [thread:$0]  %s34, 256, %s36, [#allocation6], 128, 128, 8
    $region9: #{tpu_custom_call.1} parent=1 // pred_fallthru
      _
    // Predicated region
    $region10: #{tpu_custom_call.1} parent=1 // pred_check
      _
    $region11: #{tpu_custom_call.1} parent=1 // pred_check_branch
      %43 = sbr.rel (0) target = $region13
    $region12: #{tpu_custom_call.1} parent=1 // pred_region
      %44 = dma.done [#allocation3], 256
    $region13: #{tpu_custom_call.1} parent=1 // pred_fallthru
      _
    // Predicated region
    $region14: #{tpu_custom_call.1} parent=1 // pred_check
      _
    $region15: #{tpu_custom_call.1} parent=1 // pred_check_branch
      %46 = sbr.rel (0) target = $region17
    $region16: #{tpu_custom_call.1} parent=1 // pred_region
      %47 = dma.done [#allocation6], 256
    $region17: #{tpu_custom_call.1} parent=1 // pred_fallthru
      _
    %s48 = sadd.s32 0, 0
    %s49 = smul.u32 2, %s48
    %s50 = sadd.s32 0, 0
    %s51 = smul.u32 2, %s50
    %p52 = scmp.eq.s32.totalorder 0, 0
    // Predicated region
    $region18: #{tpu_custom_call.1} parent=1 // pred_check
      %p53 = pneg %p52
    $region19: #{tpu_custom_call.1} parent=1 // pred_check_branch
      %55 = sbr.rel (%p53) target = $region21
    $region20: #{tpu_custom_call.1} parent=1 // pred_region
      %56 = vst [vmem:[#allocation7] sm:$0xff] 0.0
    $region21: #{tpu_custom_call.1} parent=1 // pred_fallthru
      _
    %v57 = vld [vmem:[#allocation2] sm:$0xff]
    %v58 = vld [vmem:[#allocation2 + $0x8] sm:$0xff]
    %v59 = vld [vmem:[#allocation5] sm:$0xff]
    %v60 = vld [vmem:[#allocation5 + $0x8] sm:$0xff]
    %61 = vmax.xlane.f32.xlu0 %v57
    %v62 = vpop.xlane.xlu0 %61
    %63 = vmax.xlane.f32.xlu0 %v58
    %v64 = vpop.xlane.xlu0 %63
    %v65 = vsub.f32 %v57, %v62
    %v66 = vsub.f32 %v58, %v64
    %v67 = vmul.f32 %v65, 1.442695
    %v68 = vpow.pop %v67
    %v69 = vmul.f32 %v66, 1.442695
    %v70 = vpow.pop %v69
    %71 = vadd.xlane.f32.xlu0 %v68
    %v72 = vpop.xlane.xlu0 %71
    %73 = vadd.xlane.f32.xlu0 %v70
    %v74 = vpop.xlane.xlu0 %73
    %v75 = vlog2.pop %v72
    %v76 = vmul.f32 %v75, 0.6931472
    %v77 = vlog2.pop %v74
    %v78 = vmul.f32 %v77, 0.6931472
    %v79 = vmul.f32 %v59, 0.9
    %v80 = vmul.f32 %v60, 0.9
    %v81 = vadd.f32 %v79, 0.00078125
    %v82 = vadd.f32 %v80, 0.00078125
    %83 = vadd.xlane.f32.xlu0 %v59
    %v84 = vpop.xlane.xlu0 %83
    %85 = vadd.xlane.f32.xlu0 %v60
    %v86 = vpop.xlane.xlu0 %85
    %v87 = vmul.f32 %v84, 0.9
    %v88 = vmul.f32 %v86, 0.9
    %v89 = vadd.f32 %v87, 0.1
    %v90 = vadd.f32 %v88, 0.1
    %v91 = vmul.f32 %v76, %v89
    %v92 = vmul.f32 %v78, %v90
    %v93 = vmul.f32 %v65, %v81
    %v94 = vmul.f32 %v66, %v82
    %95 = vadd.xlane.f32.xlu0 %v93
    %v96 = vpop.xlane.xlu0 %95
    %97 = vadd.xlane.f32.xlu0 %v94
    %v98 = vpop.xlane.xlu0 %97
    %v99 = vsub.f32 %v91, %v96
    %v100 = vsub.f32 %v92, %v98
    %v101 = vld [vmem:[#allocation7] sm:$0xff]
    %vm102 = vcmask 7168
    %v103 = vsel %vm102, %v99, 0.0
    %v104 = vsel %vm102, %v100, 0.0
    %v105 = vadd.f32 %v103, %v104
    %106 = vadd.xlane.f32.xlu0 %v105
    %v107 = vpop.xlane.xlu0 %106
    %v108 = vrot.slane %v107, 4
    %v109 = vadd.f32 %v107, %v108
    %v110 = vrot.slane %v109, 2
    %v111 = vadd.f32 %v109, %v110
    %v112 = vrot.slane %v111, 1
    %v113 = vadd.f32 %v111, %v112
    %s114 = vtos %v113
    %v115 = vstv %s114
    %v116 = vadd.f32 %v101, %v115
    %117 = vst [vmem:[#allocation7] sm:$0xff] %v116
    // Predicated region
    $region22: #{tpu_custom_call.1} parent=1 // pred_check
      _
    $region23: #{tpu_custom_call.1} parent=1 // pred_check_branch
      %119 = sbr.rel (0) target = $region25
    $region24: #{tpu_custom_call.1} parent=1 // pred_region
      %s121 = ssub.s32 128, 128
      %122 = vsyncadd [#allocation4], %s121
      %s124 = sshll.u32 [#allocation7], 4
      %s125 = int_to_ptr.vmem [resolvable:$true] %s124
      %127 = dma.vmem_to_hbm [thread:$0]  %s125, 128, %s2, [#allocation4]
    $region25: #{tpu_custom_call.1} parent=1 // pred_fallthru
      _
    // Predicated region
    $region26: #{tpu_custom_call.1} parent=1 // pred_check
      _
    $region27: #{tpu_custom_call.1} parent=1 // pred_check_branch
      %129 = sbr.rel (0) target = $region29
    $region28: #{tpu_custom_call.1} parent=1 // pred_region
      %130 = dma.done [#allocation4], 128
    $region29: #{tpu_custom_call.1} parent=1 // pred_fallthru
      _
    %131 = vsyncpa [#allocation3], 1
    %132 = vsyncpa [#allocation6], 1
    %133 = vsyncpa [#allocation4], 1

</llo_original>
